<compile_context>
chip_gen: v7x
topology: tpu7x:2x2x1
jax: 0.10.0
libtpu: 0.0.40
codegen_flags: <defaults>
</compile_context>

<pallas_src>
import jax
import jax.numpy as jnp
from jax.experimental import pallas as pl
from jax.experimental.pallas import tpu as pltpu

LOG_STD_MIN = -20.0
LOG_STD_MAX = 2.0

_ROW_ALIGN = 16        # sublane-safe for bf16 (packed) and f32 row tiles
_TB_CAP = 1024         # max rows per grid step (512-1024 is the roofline sweet spot)


def _round_up(x, m):
    return ((x + m - 1) // m) * m


def _cdiv(a, b):
    return -(-a // b)


def _tensorcores_per_chip():
    """2 for dual-TensorCore chips (v7x, megacore v4/v5p), else 1."""
    try:
        kind = jax.devices()[0].device_kind.lower()
    except Exception:
        return 1
    for tag in ("v7", "tpu7", "v4", "v5p"):
        if tag in kind:
            return 2
    return 1


# --------------------------------------------------------------------------- #
# Kernel: 3 MXU pushes + 2 bias/relu VPU passes, lane-dense bf16 output slab
# --------------------------------------------------------------------------- #
def _sac_policy_kernel(x_ref, w1_ref, b1_ref, w2_ref, b2_ref, wh_ref, out_ref):
    cdt = w1_ref.dtype  # MXU operand dtype (bf16 by default)

    # Layer 1 (input_dim -> 128): bias + relu on the VPU in f32.
    h = jnp.dot(x_ref[...], w1_ref[...], preferred_element_type=jnp.float32)
    h = jnp.maximum(h + b1_ref[...], 0.0)

    # Layer 2 (128 -> padded 64): b2 also carries the sentinel 1.0 that, after
    # the relu, feeds the fused head's bias row through the MXU for free.
    h = jnp.dot(h.astype(cdt), w2_ref[...], preferred_element_type=jnp.float32)
    h = jnp.maximum(h + b2_ref[...], 0.0)

    # Fused heads: columns [0, A) = mean, [A, 2A) = log_std (unclamped),
    # remaining lanes zero.  Clamp / slicing happens wrapper-side.
    out = jnp.dot(h.astype(cdt), wh_ref[...], preferred_element_type=jnp.float32)
    out_ref[...] = out.astype(out_ref.dtype)


# --------------------------------------------------------------------------- #
# One-time parameter preparation (padding / head fusion / bias folding / cast)
# --------------------------------------------------------------------------- #
def prepare_params(params, input_dim, hidden_dim, action_dim,
                   compute_dtype=jnp.bfloat16):
    w1, b1, w2, b2, wm, bm, ws, bs = params
    H0, H1 = hidden_dim
    A = action_dim

    H0_pad = _round_up(H0, 128)
    H1_pad = _round_up(H1 + 1, 128)          # +1 guarantees a spare sentinel lane
    OUT_pad = _round_up(2 * A, 128)
    assert H1 < H1_pad, "need a spare hidden lane for the folded head bias"
    assert 2 * A <= OUT_pad

    w1_pad = jnp.zeros((input_dim, H0_pad), jnp.float32).at[:, :H0].set(w1)
    b1_pad = jnp.zeros((1, H0_pad), jnp.float32).at[0, :H0].set(b1)

    w2_pad = jnp.zeros((H0_pad, H1_pad), jnp.float32).at[:H0, :H1].set(w2)
    b2_aug = jnp.zeros((1, H1_pad), jnp.float32).at[0, :H1].set(b2)
    b2_aug = b2_aug.at[0, H1].set(1.0)       # sentinel -> relu -> 1.0

    wh_aug = jnp.zeros((H1_pad, OUT_pad), jnp.float32)
    wh_aug = wh_aug.at[:H1, :A].set(wm)
    wh_aug = wh_aug.at[:H1, A:2 * A].set(ws)
    wh_aug = wh_aug.at[H1, :A].set(bm)       # head biases folded into the MXU
    wh_aug = wh_aug.at[H1, A:2 * A].set(bs)

    return dict(
        w1=w1_pad.astype(compute_dtype),
        b1=b1_pad,                            # stays f32 (VPU add)
        w2=w2_pad.astype(compute_dtype),
        b2=b2_aug,                            # stays f32 (VPU add)
        wh=wh_aug.astype(compute_dtype),
        input_dim=input_dim,
        action_dim=A,
        dims=(input_dim, H0_pad, H1_pad, OUT_pad),
        compute_dtype=compute_dtype,
    )


# --------------------------------------------------------------------------- #
# Tile planning + wrapper
# --------------------------------------------------------------------------- #
def _tile_plan(batch):
    """Pick (TB, n_tiles, B_pad): biggest tile up to _TB_CAP, minimal padding,
    and >= 2 parallel tiles on dual-TensorCore chips when the batch is big."""
    b_al = _round_up(max(batch, 1), _ROW_ALIGN)
    min_tiles = 2 if (_tensorcores_per_chip() >= 2 and b_al > 128) else 1
    n_tiles = max(_cdiv(b_al, _TB_CAP), min_tiles)
    tb = _round_up(_cdiv(b_al, n_tiles), _ROW_ALIGN)
    n_tiles = _cdiv(b_al, tb)
    return tb, n_tiles, tb * n_tiles


def sac_policy_forward(x, prepared, out_dtype=jnp.bfloat16):
    B = x.shape[0]
    A = prepared["action_dim"]
    input_dim, H0_pad, H1_pad, OUT_pad = prepared["dims"]
    cdt = prepared["compute_dtype"]
    assert x.shape[1] == input_dim

    TB, n_tiles, B_pad = _tile_plan(B)

    # Batch-dim padding only (rows beyond B compute bias-driven garbage and are
    # sliced off below -- never reduce over the raw (B_pad, OUT_pad) slab).
    x_pad = x if B == B_pad else jnp.concatenate(
        [x, jnp.zeros((B_pad - B, input_dim), x.dtype)], axis=0)
    x_pad = x_pad.astype(cdt)

    w1, b1, w2, b2, wh = (prepared[k] for k in ("w1", "b1", "w2", "b2", "wh"))

    w_item = jnp.dtype(cdt).itemsize
    o_item = jnp.dtype(out_dtype).itemsize
    flops = 2 * B_pad * (input_dim * H0_pad + H0_pad * H1_pad + H1_pad * OUT_pad)
    bytes_accessed = (x_pad.size * w_item
                      + (w1.size + w2.size + wh.size) * w_item
                      + (b1.size + b2.size) * 4
                      + B_pad * OUT_pad * o_item)
    cost = pl.CostEstimate(flops=int(flops), transcendentals=0,
                           bytes_accessed=int(bytes_accessed))

    out = pl.pallas_call(
        _sac_policy_kernel,
        out_shape=jax.ShapeDtypeStruct((B_pad, OUT_pad), out_dtype),
        grid=(n_tiles,),
        in_specs=[
            pl.BlockSpec((TB, input_dim), lambda i: (i, 0)),      # X row tile (unpadded lanes)
            pl.BlockSpec((input_dim, H0_pad), lambda i: (0, 0)),  # resident W1
            pl.BlockSpec((1, H0_pad), lambda i: (0, 0)),          # resident b1 (f32)
            pl.BlockSpec((H0_pad, H1_pad), lambda i: (0, 0)),     # resident W2
            pl.BlockSpec((1, H1_pad), lambda i: (0, 0)),          # resident b2 (+sentinel)
            pl.BlockSpec((H1_pad, OUT_pad), lambda i: (0, 0)),    # resident fused head
        ],
        out_specs=pl.BlockSpec((TB, OUT_pad), lambda i: (i, 0)),  # lane-dense output slab
        compiler_params=pltpu.CompilerParams(
            dimension_semantics=("parallel",)),
        cost_estimate=cost,
    )(x_pad, w1, b1, w2, b2, wh)

    # Slice / upcast / clamp wrapper-side (XLA fuses with the slice).
    mean = out[:B, :A].astype(jnp.float32)
    log_std = jnp.clip(out[:B, A:2 * A].astype(jnp.float32),
                       LOG_STD_MIN, LOG_STD_MAX)
    return mean, log_std


# --------------------------------------------------------------------------- #
# Init + references
# --------------------------------------------------------------------------- #
def init_params(key, input_dim, hidden_dim, action_dim):
    """Mimics nn.Linear's U(-1/sqrt(fan_in), 1/sqrt(fan_in)); weights [in, out]."""
    def linear(k, fan_in, fan_out):
        kw, kb = jax.random.split(k)
        bound = 1.0 / jnp.sqrt(float(fan_in))
        w = jax.random.uniform(kw, (fan_in, fan_out), jnp.float32, -bound, bound)
        b = jax.random.uniform(kb, (fan_out,), jnp.float32, -bound, bound)
        return w, b

    k1, k2, k3, k4 = jax.random.split(key, 4)
    w1, b1 = linear(k1, input_dim, hidden_dim[0])
    w2, b2 = linear(k2, hidden_dim[0], hidden_dim[1])
    wm, bm = linear(k3, hidden_dim[1], action_dim)
    ws, bs = linear(k4, hidden_dim[1], action_dim)
    return (w1, b1, w2, b2, wm, bm, ws, bs)


def reference_forward(x, params):
    """Pure-f32 reference with the original module semantics."""
    w1, b1, w2, b2, wm, bm, ws, bs = params
    hp = jax.lax.Precision.HIGHEST
    h = jnp.maximum(jnp.dot(x, w1, precision=hp) + b1, 0.0)
    h = jnp.maximum(jnp.dot(h, w2, precision=hp) + b2, 0.0)
    mean = jnp.dot(h, wm, precision=hp) + bm
    log_std = jnp.clip(jnp.dot(h, ws, precision=hp) + bs, LOG_STD_MIN, LOG_STD_MAX)
    return mean, log_std


def matched_reference(x, prepared, out_dtype=jnp.bfloat16):
    """Reference mirroring the kernel's fusion / casts exactly (tight checks)."""
    A = prepared["action_dim"]
    cdt = prepared["compute_dtype"]
    xp = x.astype(cdt)
    h = jnp.dot(xp, prepared["w1"], preferred_element_type=jnp.float32)
    h = jnp.maximum(h + prepared["b1"], 0.0)
    h = jnp.dot(h.astype(cdt), prepared["w2"], preferred_element_type=jnp.float32)
    h = jnp.maximum(h + prepared["b2"], 0.0)
    out = jnp.dot(h.astype(cdt), prepared["wh"],
                  preferred_element_type=jnp.float32).astype(out_dtype)
    mean = out[:, :A].astype(jnp.float32)
    log_std = jnp.clip(out[:, A:2 * A].astype(jnp.float32),
                       LOG_STD_MIN, LOG_STD_MAX)
    return mean, log_std


# --------------------------------------------------------------------------- #
# Self-test
# --------------------------------------------------------------------------- #
if __name__ == "__main__":
    key = jax.random.PRNGKey(0)
    k_x, k_p, k_x2 = jax.random.split(key, 3)

    batch = 2
    input_dim = 8
    hidden_dim = (128, 64)
    action_dim = 4  # e.g. action_bounds = ([-1]*4, [1]*4)

    params = init_params(k_p, input_dim, hidden_dim, action_dim)
    x = jax.random.normal(k_x, (batch, input_dim), jnp.float32)

    # --- default perf config: bf16 MXU operands, bf16 output slab ---
    prep_bf16 = prepare_params(params, input_dim, hidden_dim, action_dim,
                               compute_dtype=jnp.bfloat16)
    mean, log_std = sac_policy_forward(x, prep_bf16)
    jax.block_until_ready((mean, log_std))
    assert mean.shape == (batch, action_dim)
    assert log_std.shape == (batch, action_dim)

    m_ref, s_ref = matched_reference(x, prep_bf16)
    assert jnp.allclose(mean, m_ref, atol=2e-3, rtol=2e-3)
    assert jnp.allclose(log_std, s_ref, atol=2e-3, rtol=2e-3)

    # loose sanity check against the pure-f32 module semantics (bf16 rounding)
    m_f32, s_f32 = reference_forward(x, params)
    assert jnp.allclose(mean, m_f32, atol=1e-1)
    assert jnp.allclose(log_std, s_f32, atol=1e-1)

    # --- f32 operand / f32 output path (accuracy mode; discouraged on v5e) ---
    prep_f32 = prepare_params(params, input_dim, hidden_dim, action_dim,
                              compute_dtype=jnp.float32)
    mean32, log_std32 = sac_policy_forward(x, prep_f32, out_dtype=jnp.float32)
    jax.block_until_ready((mean32, log_std32))
    assert jnp.allclose(mean32, m_f32, atol=2e-2, rtol=2e-2)
    assert jnp.allclose(log_std32, s_f32, atol=2e-2, rtol=2e-2)

    # --- exercise the multi-tile grid path (B > tile cap, non-multiple of 16) ---
    xb = jax.random.normal(k_x2, (1500, input_dim), jnp.float32)
    mb, sb = sac_policy_forward(xb, prep_bf16)
    jax.block_until_ready((mb, sb))
    mb_ref, sb_ref = matched_reference(xb, prep_bf16)
    assert mb.shape == (1500, action_dim) and sb.shape == (1500, action_dim)
    assert jnp.allclose(mb, mb_ref, atol=2e-3, rtol=2e-3)
    assert jnp.allclose(sb, sb_ref, atol=2e-3, rtol=2e-3)

    print("KERNEL_OK")
</pallas_src>

<mosaic_0001>
module attributes {stable_mosaic.version = 11 : i64} {
  func.func @_sac_policy_kernel(%arg0: i32, %arg1: memref<16x8xbf16, #tpu.memory_space<vmem>>, %arg2: memref<8x128xbf16, #tpu.memory_space<vmem>>, %arg3: memref<1x128xf32, #tpu.memory_space<vmem>>, %arg4: memref<128x128xbf16, #tpu.memory_space<vmem>>, %arg5: memref<1x128xf32, #tpu.memory_space<vmem>>, %arg6: memref<128x128xbf16, #tpu.memory_space<vmem>>, %arg7: memref<16x128xbf16, #tpu.memory_space<vmem>>) attributes {dimension_semantics = [#tpu.dimension_semantics<parallel>], iteration_bounds = array<i64: 1>, scalar_prefetch = 0 : i64, scratch_operands = 0 : i64, tpu.core_type = #tpu.core_type<tc>, window_params = [{transform_indices = @transform_0, window_bounds = array<i64: 16, 8>}, {pipeline_mode = #tpu.pipeline_mode<synchronous>, transform_indices = @transform_1, window_bounds = array<i64: 8, 128>}, {pipeline_mode = #tpu.pipeline_mode<synchronous>, transform_indices = @transform_2, window_bounds = array<i64: 1, 128>}, {pipeline_mode = #tpu.pipeline_mode<synchronous>, transform_indices = @transform_3, window_bounds = array<i64: 128, 128>}, {pipeline_mode = #tpu.pipeline_mode<synchronous>, transform_indices = @transform_4, window_bounds = array<i64: 1, 128>}, {pipeline_mode = #tpu.pipeline_mode<synchronous>, transform_indices = @transform_5, window_bounds = array<i64: 128, 128>}, {transform_indices = @transform_6, window_bounds = array<i64: 16, 128>}]} {
    %c0 = arith.constant 0 : index
    %c0_0 = arith.constant 0 : index
    %0 = vector.load %arg1[%c0, %c0_0] : memref<16x8xbf16, #tpu.memory_space<vmem>>, vector<16x8xbf16>
    %c0_1 = arith.constant 0 : index
    %c0_2 = arith.constant 0 : index
    %1 = vector.load %arg2[%c0_1, %c0_2] : memref<8x128xbf16, #tpu.memory_space<vmem>>, vector<8x128xbf16>
    %cst = arith.constant dense<0.000000e+00> : vector<16x128xf32>
    %2 = tpu.matmul %0, %1, %cst {dimension_numbers = #tpu.dot_dimension_numbers<[1], [0], [0], [1], [0, 0, 1, 1], [], []>} : vector<16x8xbf16>, vector<8x128xbf16>, vector<16x128xf32> -> vector<16x128xf32>
    %c0_3 = arith.constant 0 : index
    %c0_4 = arith.constant 0 : index
    %3 = vector.load %arg3[%c0_3, %c0_4] : memref<1x128xf32, #tpu.memory_space<vmem>>, vector<1x128xf32>
    %4 = vector.broadcast %3 : vector<1x128xf32> to vector<16x128xf32>
    %5 = arith.addf %2, %4 : vector<16x128xf32>
    %cst_5 = arith.constant 0.000000e+00 : f32
    %6 = vector.broadcast %cst_5 : f32 to vector<16x128xf32>
    %7 = arith.maximumf %5, %6 : vector<16x128xf32>
    %8 = arith.truncf %7 : vector<16x128xf32> to vector<16x128xbf16>
    %c0_6 = arith.constant 0 : index
    %c0_7 = arith.constant 0 : index
    %9 = vector.load %arg4[%c0_6, %c0_7] : memref<128x128xbf16, #tpu.memory_space<vmem>>, vector<128x128xbf16>
    %cst_8 = arith.constant dense<0.000000e+00> : vector<16x128xf32>
    %10 = tpu.matmul %8, %9, %cst_8 {dimension_numbers = #tpu.dot_dimension_numbers<[1], [0], [0], [1], [0, 0, 1, 1], [], []>} : vector<16x128xbf16>, vector<128x128xbf16>, vector<16x128xf32> -> vector<16x128xf32>
    %c0_9 = arith.constant 0 : index
    %c0_10 = arith.constant 0 : index
    %11 = vector.load %arg5[%c0_9, %c0_10] : memref<1x128xf32, #tpu.memory_space<vmem>>, vector<1x128xf32>
    %12 = vector.broadcast %11 : vector<1x128xf32> to vector<16x128xf32>
    %13 = arith.addf %10, %12 : vector<16x128xf32>
    %cst_11 = arith.constant 0.000000e+00 : f32
    %14 = vector.broadcast %cst_11 : f32 to vector<16x128xf32>
    %15 = arith.maximumf %13, %14 : vector<16x128xf32>
    %16 = arith.truncf %15 : vector<16x128xf32> to vector<16x128xbf16>
    %c0_12 = arith.constant 0 : index
    %c0_13 = arith.constant 0 : index
    %17 = vector.load %arg6[%c0_12, %c0_13] : memref<128x128xbf16, #tpu.memory_space<vmem>>, vector<128x128xbf16>
    %cst_14 = arith.constant dense<0.000000e+00> : vector<16x128xf32>
    %18 = tpu.matmul %16, %17, %cst_14 {dimension_numbers = #tpu.dot_dimension_numbers<[1], [0], [0], [1], [0, 0, 1, 1], [], []>} : vector<16x128xbf16>, vector<128x128xbf16>, vector<16x128xf32> -> vector<16x128xf32>
    %19 = arith.truncf %18 : vector<16x128xf32> to vector<16x128xbf16>
    %c0_15 = arith.constant 0 : index
    %c0_16 = arith.constant 0 : index
    %20 = vector.load %arg7[%c0_15, %c0_16] : memref<16x128xbf16, #tpu.memory_space<vmem>>, vector<16x128xbf16>
    tpu.vector_store %arg7[%c0_15, %c0_16], %19 {strides = array<i32>} : memref<16x128xbf16, #tpu.memory_space<vmem>>, vector<16x128xbf16>,
    return
  }
  func.func @transform_0(%arg0: i32) -> (i32, i32) {
    %c0_i32 = arith.constant 0 : i32
    %c0_i32_0 = arith.constant 0 : i32
    return %arg0, %c0_i32 : i32, i32
  }
  func.func @transform_1(%arg0: i32) -> (i32, i32) {
    %c0_i32 = arith.constant 0 : i32
    %c0_i32_0 = arith.constant 0 : i32
    %c0_i32_1 = arith.constant 0 : i32
    return %c0_i32, %c0_i32_0 : i32, i32
  }
  func.func @transform_2(%arg0: i32) -> (i32, i32) {
    %c0_i32 = arith.constant 0 : i32
    %c0_i32_0 = arith.constant 0 : i32
    %c0_i32_1 = arith.constant 0 : i32
    return %c0_i32, %c0_i32_0 : i32, i32
  }
  func.func @transform_3(%arg0: i32) -> (i32, i32) {
    %c0_i32 = arith.constant 0 : i32
    %c0_i32_0 = arith.constant 0 : i32
    %c0_i32_1 = arith.constant 0 : i32
    return %c0_i32, %c0_i32_0 : i32, i32
  }
  func.func @transform_4(%arg0: i32) -> (i32, i32) {
    %c0_i32 = arith.constant 0 : i32
    %c0_i32_0 = arith.constant 0 : i32
    %c0_i32_1 = arith.constant 0 : i32
    return %c0_i32, %c0_i32_0 : i32, i32
  }
  func.func @transform_5(%arg0: i32) -> (i32, i32) {
    %c0_i32 = arith.constant 0 : i32
    %c0_i32_0 = arith.constant 0 : i32
    %c0_i32_1 = arith.constant 0 : i32
    return %c0_i32, %c0_i32_0 : i32, i32
  }
  func.func @transform_6(%arg0: i32) -> (i32, i32) {
    %c0_i32 = arith.constant 0 : i32
    %c0_i32_0 = arith.constant 0 : i32
    return %arg0, %c0_i32 : i32, i32
  }
}

</mosaic_0001>

<llo_original>
// kernel: tpu_custom_call.1
$region0: #{tpu_custom_call.1}
  #allocation0 [shape = 'u32[]', space=smem, size = 0x4, offset = 0x4, fixed_abs, tag = 'smem constant byte address 0x4 - core index']
  #allocation1 [shape = 'u32[144,128]{1,0:T(1,128)}', space=vmem, size = 0x12000, scoped, tag = 'internal scratch']
  %s0 = inlined_call_operand.vmem [shape: bf16[16,8], index: 0, kind: input, shape index: {}]
  %s1 = inlined_call_operand.vmem [shape: bf16[8,128], index: 1, kind: input, shape index: {}]
  %s2 = inlined_call_operand.vmem [shape: f32[1,128], index: 2, kind: input, shape index: {}]
  %s3 = inlined_call_operand.hbm [shape: bf16[128,128], index: 3, kind: input, shape index: {}]
  %s4 = inlined_call_operand.vmem [shape: f32[1,128], index: 4, kind: input, shape index: {}]
  %s5 = inlined_call_operand.hbm [shape: bf16[128,128], index: 5, kind: input, shape index: {}]
  %s6 = inlined_call_operand.hbm [shape: bf16[16,128], index: 6, kind: output, shape index: {}]
  %s7 = sld [smem:[#allocation0]]
  $region42: #{tpu_custom_call.1} parent=0
    _
  %s9 = ssub.s32 1, %s7
  %s10 = scalar_select 0, %s9, %s7
  $region1: #{tpu_custom_call.1} parent=0
    #allocation2 [shape = 'u8[32768]{0}', space=vmem, size = 0x8000, scoped, tag = 'input window, operand 3, single buffered']
    #allocation3 [shape = 's32[1]{0}', space=sflag, size = 0x4, scoped, tag = 'scoped memory for tpu_custom_call.1']
    #allocation4 [shape = 's32[1]{0}', space=sflag, size = 0x4, scoped, tag = 'scoped memory for tpu_custom_call.1']
    #allocation5 [shape = 'u8[32768]{0}', space=vmem, size = 0x8000, scoped, tag = 'input window, operand 5, single buffered']
    #allocation6 [shape = 's32[1]{0}', space=sflag, size = 0x4, scoped, tag = 'scoped memory for tpu_custom_call.1']
    #allocation7 [shape = 'u8[4096]{0}', space=vmem, size = 0x1000, scoped, tag = 'output window, operand 0, single buffered']
    %11 = vsyncpa [#allocation3], 0
    %12 = vsyncpa [#allocation6], 0
    %13 = vsyncpa [#allocation4], 0
    // Predicated region
    $region2: #{tpu_custom_call.1} parent=1 // pred_check
      _
    $region3: #{tpu_custom_call.1} parent=1 // pred_check_branch
      %15 = sbr.rel (0) target = $region5
    $region4: #{tpu_custom_call.1} parent=1 // pred_region
      _
    $region5: #{tpu_custom_call.1} parent=1 // pred_fallthru
      _
    // Predicated region
    $region6: #{tpu_custom_call.1} parent=1 // pred_check
      _
    $region7: #{tpu_custom_call.1} parent=1 // pred_check_branch
      %17 = sbr.rel (0) target = $region9
    $region8: #{tpu_custom_call.1} parent=1 // pred_region
      _
    $region9: #{tpu_custom_call.1} parent=1 // pred_fallthru
      _
    // Predicated region
    $region10: #{tpu_custom_call.1} parent=1 // pred_check
      _
    $region11: #{tpu_custom_call.1} parent=1 // pred_check_branch
      %19 = sbr.rel (0) target = $region13
    $region12: #{tpu_custom_call.1} parent=1 // pred_region
      _
    $region13: #{tpu_custom_call.1} parent=1 // pred_fallthru
      _
    // Predicated region
    $region14: #{tpu_custom_call.1} parent=1 // pred_check
      _
    $region15: #{tpu_custom_call.1} parent=1 // pred_check_branch
      %21 = sbr.rel (0) target = $region17
    $region16: #{tpu_custom_call.1} parent=1 // pred_region
      %s23 = ssub.s32 1024, 1024
      %24 = vsyncadd [#allocation3], %s23
      %s25 = sshll.u32 [#allocation2], 4
      %s26 = int_to_ptr.vmem [resolvable:$true] %s25
      %31 = dma.hbm_to_vmem [thread:$0]  %s3, 1024, %s26, [#allocation3], 64, 64, 4
    $region17: #{tpu_custom_call.1} parent=1 // pred_fallthru
      _
    // Predicated region
    $region18: #{tpu_custom_call.1} parent=1 // pred_check
      _
    $region19: #{tpu_custom_call.1} parent=1 // pred_check_branch
      %33 = sbr.rel (0) target = $region21
    $region20: #{tpu_custom_call.1} parent=1 // pred_region
      _
    $region21: #{tpu_custom_call.1} parent=1 // pred_fallthru
      _
    // Predicated region
    $region22: #{tpu_custom_call.1} parent=1 // pred_check
      _
    $region23: #{tpu_custom_call.1} parent=1 // pred_check_branch
      %35 = sbr.rel (0) target = $region25
    $region24: #{tpu_custom_call.1} parent=1 // pred_region
      %s37 = ssub.s32 1024, 1024
      %38 = vsyncadd [#allocation6], %s37
      %s39 = sshll.u32 [#allocation5], 4
      %s40 = int_to_ptr.vmem [resolvable:$true] %s39
      %45 = dma.hbm_to_vmem [thread:$0]  %s5, 1024, %s40, [#allocation6], 64, 64, 4
    $region25: #{tpu_custom_call.1} parent=1 // pred_fallthru
      _
    // Predicated region
    $region26: #{tpu_custom_call.1} parent=1 // pred_check
      _
    $region27: #{tpu_custom_call.1} parent=1 // pred_check_branch
      %47 = sbr.rel (0) target = $region29
    $region28: #{tpu_custom_call.1} parent=1 // pred_region
      %48 = dma.done [#allocation3], 1024
    $region29: #{tpu_custom_call.1} parent=1 // pred_fallthru
      _
    // Predicated region
    $region30: #{tpu_custom_call.1} parent=1 // pred_check
      _
    $region31: #{tpu_custom_call.1} parent=1 // pred_check_branch
      %50 = sbr.rel (0) target = $region33
    $region32: #{tpu_custom_call.1} parent=1 // pred_region
      %51 = dma.done [#allocation6], 1024
    $region33: #{tpu_custom_call.1} parent=1 // pred_fallthru
      _
    %v53 = vld [vmem:[%s0] sm:$0xf]
    %v54 = vld [vmem:[%s0 + $0x4] sm:$0xf]
    %v55 = vld [vmem:[%s1] sm:$0xf]
    %v56 = vld [vmem:[%s2] sm:$0x1]
    %v58 = vlaneseq
    %v59 = vshrl.u32 %v58, 7
    %v60 = vsub.s32 0, %v59
    %v61 = vrot.slane %v56, %v60
    %v65 = vunpack.c.l.b16 %v53
    %v66 = vunpack.c.l.b16 %v54
    %v67 = vpack.c.b16 %v66, %v65
    %vm68 = vcmask 64512
    %v70 = vsel %vm68, %v67, 0
    %vm72 = vcmask 1043456
    %v74 = vsel %vm72, %v55, 0
    %76 = vmatprep.subr.bf16.mxu0 0
    %77 = vmatpush1.bf16.msra.mxu0 %v74
    %78 = vmatprep.subr.bf16.mxu0 0
    %79 = vmatpush1.bf16.msra.mxu0 0
    %80 = vmatprep.subr.bf16.mxu0 0
    %81 = vmatpush1.bf16.msra.mxu0 0
    %82 = vmatprep.subr.bf16.mxu0 0
    %83 = vmatpush1.bf16.msra.mxu0 0
    %84 = vmatprep.subr.bf16.mxu0 0
    %85 = vmatpush1.bf16.msra.mxu0 0
    %86 = vmatprep.subr.bf16.mxu0 0
    %87 = vmatpush1.bf16.msra.mxu0 0
    %88 = vmatprep.subr.bf16.mxu0 0
    %89 = vmatpush1.bf16.msra.mxu0 0
    %90 = vmatprep.subr.bf16.mxu0 0
    %91 = vmatpush1.bf16.msra.mxu0 0
    %92 = vmatprep.subr.bf16.mxu0 0
    %93 = vmatpush1.bf16.msra.mxu0 0
    %94 = vmatprep.subr.bf16.mxu0 0
    %95 = vmatpush1.bf16.msra.mxu0 0
    %96 = vmatprep.subr.bf16.mxu0 0
    %97 = vmatpush1.bf16.msra.mxu0 0
    %98 = vmatprep.subr.bf16.mxu0 0
    %99 = vmatpush1.bf16.msra.mxu0 0
    %100 = vmatprep.subr.bf16.mxu0 0
    %101 = vmatpush1.bf16.msra.mxu0 0
    %102 = vmatprep.subr.bf16.mxu0 0
    %103 = vmatpush1.bf16.msra.mxu0 0
    %104 = vmatprep.subr.bf16.mxu0 0
    %105 = vmatpush1.bf16.msra.mxu0 0
    %106 = vmatprep.subr.bf16.mxu0 0
    %107 = vmatpush1.bf16.msra.mxu0 0
    %108 = vmatprep.mubr.bf16.mxu0 0
    %109 = vmatmul.mubr.bf16.gmra.mrb[0].mxu0 %v70
    %v110 = vpop.f32.mrb[0].mxu0
    %v111 = vadd.f32 %v61, %v110
    %v112 = vpop.f32.mrb[0].mxu0
    %v113 = vpop.f32.mrb[0].mxu0
    %v114 = vadd.f32 %v61, %v113
    %v115 = vpop.f32.mrb[0].mxu0
    %116 = vdwg.mxu0
    %v117 = vmax.f32 %v111, 0.0
    %v118 = vmax.f32 %v114, 0.0
    %v119 = vpack.c.bf16 %v118, %v117
    %v120 = vld [vmem:[#allocation2] sm:$0xf]
    %v121 = vld [vmem:[#allocation2 + $0x4] sm:$0xf]
    %v122 = vld [vmem:[#allocation2 + $0x8] sm:$0xf]
    %v123 = vld [vmem:[#allocation2 + $0xc] sm:$0xf]
    %v124 = vld [vmem:[#allocation2 + $0x10] sm:$0xf]
    %v125 = vld [vmem:[#allocation2 + $0x14] sm:$0xf]
    %v126 = vld [vmem:[#allocation2 + $0x18] sm:$0xf]
    %v127 = vld [vmem:[#allocation2 + $0x1c] sm:$0xf]
    %v128 = vld [vmem:[#allocation2 + $0x20] sm:$0xf]
    %v129 = vld [vmem:[#allocation2 + $0x24] sm:$0xf]
    %v130 = vld [vmem:[#allocation2 + $0x28] sm:$0xf]
    %v131 = vld [vmem:[#allocation2 + $0x2c] sm:$0xf]
    %v132 = vld [vmem:[#allocation2 + $0x30] sm:$0xf]
    %v133 = vld [vmem:[#allocation2 + $0x34] sm:$0xf]
    %v134 = vld [vmem:[#allocation2 + $0x38] sm:$0xf]
    %v135 = vld [vmem:[#allocation2 + $0x3c] sm:$0xf]
    %v136 = vld [vmem:[%s4] sm:$0x1]
    %v138 = vlaneseq
    %v139 = vshrl.u32 %v138, 7
    %v140 = vsub.s32 0, %v139
    %v141 = vrot.slane %v136, %v140
    %v159 = vunpack.c.l.b16 %v120
    %v160 = vunpack.c.l.b16 %v121
    %v161 = vunpack.c.l.b16 %v122
    %v162 = vunpack.c.l.b16 %v123
    %v163 = vunpack.c.l.b16 %v124
    %v164 = vunpack.c.l.b16 %v125
    %v165 = vunpack.c.l.b16 %v126
    %v166 = vunpack.c.l.b16 %v127
    %v167 = vunpack.c.l.b16 %v128
    %v168 = vunpack.c.l.b16 %v129
    %v169 = vunpack.c.l.b16 %v130
    %v170 = vunpack.c.l.b16 %v131
    %v171 = vunpack.c.l.b16 %v132
    %v172 = vunpack.c.l.b16 %v133
    %v173 = vunpack.c.l.b16 %v134
    %v174 = vunpack.c.l.b16 %v135
    %v175 = vpack.c.b16 %v160, %v159
    %v176 = vpack.c.b16 %v162, %v161
    %v177 = vpack.c.b16 %v164, %v163
    %v178 = vpack.c.b16 %v166, %v165
    %v179 = vpack.c.b16 %v168, %v167
    %v180 = vpack.c.b16 %v170, %v169
    %v181 = vpack.c.b16 %v172, %v171
    %v182 = vpack.c.b16 %v174, %v173
    %191 = vmatprep.subr.bf16.mxu0 0
    %192 = vmatpush1.bf16.msra.mxu0 %v175
    %193 = vmatprep.subr.bf16.mxu0 0
    %194 = vmatpush1.bf16.msra.mxu0 %v176
    %195 = vmatprep.subr.bf16.mxu0 0
    %196 = vmatpush1.bf16.msra.mxu0 %v177
    %197 = vmatprep.subr.bf16.mxu0 0
    %198 = vmatpush1.bf16.msra.mxu0 %v178
    %199 = vmatprep.subr.bf16.mxu0 0
    %200 = vmatpush1.bf16.msra.mxu0 %v179
    %201 = vmatprep.subr.bf16.mxu0 0
    %202 = vmatpush1.bf16.msra.mxu0 %v180
    %203 = vmatprep.subr.bf16.mxu0 0
    %204 = vmatpush1.bf16.msra.mxu0 %v181
    %205 = vmatprep.subr.bf16.mxu0 0
    %206 = vmatpush1.bf16.msra.mxu0 %v182
    %207 = vmatprep.subr.bf16.mxu0 0
    %208 = vmatpush1.bf16.msra.mxu0 0
    %209 = vmatprep.subr.bf16.mxu0 0
    %210 = vmatpush1.bf16.msra.mxu0 0
    %211 = vmatprep.subr.bf16.mxu0 0
    %212 = vmatpush1.bf16.msra.mxu0 0
    %213 = vmatprep.subr.bf16.mxu0 0
    %214 = vmatpush1.bf16.msra.mxu0 0
    %215 = vmatprep.subr.bf16.mxu0 0
    %216 = vmatpush1.bf16.msra.mxu0 0
    %217 = vmatprep.subr.bf16.mxu0 0
    %218 = vmatpush1.bf16.msra.mxu0 0
    %219 = vmatprep.subr.bf16.mxu0 0
    %220 = vmatpush1.bf16.msra.mxu0 0
    %221 = vmatprep.subr.bf16.mxu0 0
    %222 = vmatpush1.bf16.msra.mxu0 0
    %223 = vmatprep.mubr.bf16.mxu0 0
    %224 = vmatmul.mubr.bf16.gmra.mrb[0].mxu0 %v119
    %v225 = vpop.f32.mrb[0].mxu0
    %v226 = vadd.f32 %v141, %v225
    %v227 = vpop.f32.mrb[0].mxu0
    %v228 = vpop.f32.mrb[0].mxu0
    %v229 = vadd.f32 %v141, %v228
    %v230 = vpop.f32.mrb[0].mxu0
    %231 = vdwg.mxu0
    %v232 = vmax.f32 %v226, 0.0
    %v233 = vmax.f32 %v229, 0.0
    %v234 = vpack.c.bf16 %v233, %v232
    %v235 = vld [vmem:[#allocation5] sm:$0xf]
    %v236 = vld [vmem:[#allocation5 + $0x4] sm:$0xf]
    %v237 = vld [vmem:[#allocation5 + $0x8] sm:$0xf]
    %v238 = vld [vmem:[#allocation5 + $0xc] sm:$0xf]
    %v239 = vld [vmem:[#allocation5 + $0x10] sm:$0xf]
    %v240 = vld [vmem:[#allocation5 + $0x14] sm:$0xf]
    %v241 = vld [vmem:[#allocation5 + $0x18] sm:$0xf]
    %v242 = vld [vmem:[#allocation5 + $0x1c] sm:$0xf]
    %v243 = vld [vmem:[#allocation5 + $0x20] sm:$0xf]
    %v244 = vld [vmem:[#allocation5 + $0x24] sm:$0xf]
    %v245 = vld [vmem:[#allocation5 + $0x28] sm:$0xf]
    %v246 = vld [vmem:[#allocation5 + $0x2c] sm:$0xf]
    %v247 = vld [vmem:[#allocation5 + $0x30] sm:$0xf]
    %v248 = vld [vmem:[#allocation5 + $0x34] sm:$0xf]
    %v249 = vld [vmem:[#allocation5 + $0x38] sm:$0xf]
    %v250 = vld [vmem:[#allocation5 + $0x3c] sm:$0xf]
    %v267 = vunpack.c.l.b16 %v235
    %v268 = vunpack.c.l.b16 %v236
    %v269 = vunpack.c.l.b16 %v237
    %v270 = vunpack.c.l.b16 %v238
    %v271 = vunpack.c.l.b16 %v239
    %v272 = vunpack.c.l.b16 %v240
    %v273 = vunpack.c.l.b16 %v241
    %v274 = vunpack.c.l.b16 %v242
    %v275 = vunpack.c.l.b16 %v243
    %v276 = vunpack.c.l.b16 %v244
    %v277 = vunpack.c.l.b16 %v245
    %v278 = vunpack.c.l.b16 %v246
    %v279 = vunpack.c.l.b16 %v247
    %v280 = vunpack.c.l.b16 %v248
    %v281 = vunpack.c.l.b16 %v249
    %v282 = vunpack.c.l.b16 %v250
    %v283 = vpack.c.b16 %v268, %v267
    %v284 = vpack.c.b16 %v270, %v269
    %v285 = vpack.c.b16 %v272, %v271
    %v286 = vpack.c.b16 %v274, %v273
    %v287 = vpack.c.b16 %v276, %v275
    %v288 = vpack.c.b16 %v278, %v277
    %v289 = vpack.c.b16 %v280, %v279
    %v290 = vpack.c.b16 %v282, %v281
    %299 = vmatprep.subr.bf16.mxu0 0
    %300 = vmatpush1.bf16.msra.mxu0 %v283
    %301 = vmatprep.subr.bf16.mxu0 0
    %302 = vmatpush1.bf16.msra.mxu0 %v284
    %303 = vmatprep.subr.bf16.mxu0 0
    %304 = vmatpush1.bf16.msra.mxu0 %v285
    %305 = vmatprep.subr.bf16.mxu0 0
    %306 = vmatpush1.bf16.msra.mxu0 %v286
    %307 = vmatprep.subr.bf16.mxu0 0
    %308 = vmatpush1.bf16.msra.mxu0 %v287
    %309 = vmatprep.subr.bf16.mxu0 0
    %310 = vmatpush1.bf16.msra.mxu0 %v288
    %311 = vmatprep.subr.bf16.mxu0 0
    %312 = vmatpush1.bf16.msra.mxu0 %v289
    %313 = vmatprep.subr.bf16.mxu0 0
    %314 = vmatpush1.bf16.msra.mxu0 %v290
    %315 = vmatprep.subr.bf16.mxu0 0
    %316 = vmatpush1.bf16.msra.mxu0 0
    %317 = vmatprep.subr.bf16.mxu0 0
    %318 = vmatpush1.bf16.msra.mxu0 0
    %319 = vmatprep.subr.bf16.mxu0 0
    %320 = vmatpush1.bf16.msra.mxu0 0
    %321 = vmatprep.subr.bf16.mxu0 0
    %322 = vmatpush1.bf16.msra.mxu0 0
    %323 = vmatprep.subr.bf16.mxu0 0
    %324 = vmatpush1.bf16.msra.mxu0 0
    %325 = vmatprep.subr.bf16.mxu0 0
    %326 = vmatpush1.bf16.msra.mxu0 0
    %327 = vmatprep.subr.bf16.mxu0 0
    %328 = vmatpush1.bf16.msra.mxu0 0
    %329 = vmatprep.subr.bf16.mxu0 0
    %330 = vmatpush1.bf16.msra.mxu0 0
    %331 = vmatprep.mubr.bf16.mxu0 0
    %332 = vmatmul.mubr.bf16.gmra.mrb[0].mxu0 %v234
    %v333 = vpop.f32.mrb[0].mxu0
    %v334 = vadd.f32 0.0, %v333
    %v335 = vpop.f32.mrb[0].mxu0
    %v336 = vpop.f32.mrb[0].mxu0
    %v337 = vadd.f32 0.0, %v336
    %v338 = vpop.f32.mrb[0].mxu0
    %339 = vdwg.mxu0
    %v340 = vpack.c.bf16 %v337, %v334
    %v342 = vunpack.c.l.b16 %v340
    %v343 = vunpack.c.h.b16 %v340
    %v344 = vpack.c.b16 %v342, %v342
    %v345 = vpack.c.b16 %v343, %v343
    %348 = vst [vmem:[#allocation7] sm:$0xf] %v344
    %349 = vst [vmem:[#allocation7 + $0x4] sm:$0xf] %v345
    // Predicated region
    $region34: #{tpu_custom_call.1} parent=1 // pred_check
      _
    $region35: #{tpu_custom_call.1} parent=1 // pred_check_branch
      %351 = sbr.rel (0) target = $region37
    $region36: #{tpu_custom_call.1} parent=1 // pred_region
      %s353 = ssub.s32 128, 128
      %354 = vsyncadd [#allocation4], %s353
      %s355 = sshll.u32 [#allocation7], 4
      %s356 = int_to_ptr.vmem [resolvable:$true] %s355
      %361 = dma.vmem_to_hbm [thread:$0]  %s356, 128, %s6, [#allocation4], 64, 64, 4
    $region37: #{tpu_custom_call.1} parent=1 // pred_fallthru
      _
    // Predicated region
    $region38: #{tpu_custom_call.1} parent=1 // pred_check
      _
    $region39: #{tpu_custom_call.1} parent=1 // pred_check_branch
      %363 = sbr.rel (0) target = $region41
    $region40: #{tpu_custom_call.1} parent=1 // pred_region
      %364 = dma.done [#allocation4], 128
    $region41: #{tpu_custom_call.1} parent=1 // pred_fallthru
      _
    %365 = vsyncpa [#allocation3], 1
    %366 = vsyncpa [#allocation6], 1
    %367 = vsyncpa [#allocation4], 1

</llo_original>
